<compile_context>
chip_gen: v5e
topology: v5e:2x2
jax: 0.10.0
libtpu: 0.0.40
codegen_flags: <defaults>
</compile_context>

<pallas_src>
import jax
import jax.numpy as jnp
from jax.experimental import pallas as pl
from jax.experimental.pallas import tpu as pltpu

RMS_NORM_EPS = 1e-6
_LANE = 128        # pad num_experts up to this for a lane-dense output store
_SUBLANE = 8       # batch tiles are multiples of this (or the exact tiny batch)
_NEG_INF = -1e30   # finite "-inf" bias for padded expert columns


def _round_up(x, m):
    return (x + m - 1) // m * m


def _pick_batch_tile(batch, block_b):
    """Batch tile: >=4 grid steps for large batches, sublane-aligned, <= block_b."""
    if batch <= _SUBLANE:
        return batch  # one exact block; tb == full dim satisfies the tiling rule
    tb = min(_round_up(block_b, _SUBLANE), _round_up(pl.cdiv(batch, 4), _SUBLANE))
    return max(tb, _SUBLANE)


def _gating_head_kernel(x_ref, w_ref, b_ref, o_ref):
    # x_ref: [tb, H]      token-0 hidden states (backbone dtype, e.g. bf16)
    # w_ref: [H, E_pad]   gamma-folded classifier weight^T, zero-padded cols (bf16)
    # b_ref: [1, E_pad]   classifier bias, padded cols = -1e30 (f32)
    # o_ref: [tb, E_pad]  softmax probabilities (f32)
    x = x_ref[...]
    xf = x.astype(jnp.float32)
    # LlamaRMSNorm statistics in f32 (only the per-row scale; gamma is folded
    # into the weight so this is the single VPU pass over the [tb, H] tile).
    var = jnp.mean(xf * xf, axis=-1, keepdims=True)
    inv_rms = jax.lax.rsqrt(var + RMS_NORM_EPS)               # [tb, 1] f32
    # Classifier on the MXU: bf16 operands, f32 accumulation.  Applying the
    # RMS scale to the [tb, E_pad] logits is algebraically identical to
    # normalizing the [tb, H] activations first.
    logits = jnp.dot(x.astype(jnp.bfloat16), w_ref[...],
                     preferred_element_type=jnp.float32) * inv_rms + b_ref[...]
    # Softmax over (padded) experts; padded columns underflow exp() to 0.
    m = jnp.max(logits, axis=-1, keepdims=True)
    e = jnp.exp(logits - m)
    denom = jnp.sum(e, axis=-1, keepdims=True)
    o_ref[...] = e * pl.reciprocal(denom)  # exact: probs sum to 1


def prepare_gating_params(rms_weight, cls_weight_t, cls_bias):
    """One-time (init-time) prep: fold gamma into W^T, pad to 128 lanes, cast bf16."""
    H, E = cls_weight_t.shape
    e_pad = _round_up(max(E, _LANE), _LANE)
    w_folded = rms_weight.astype(jnp.float32)[:, None] * cls_weight_t.astype(jnp.float32)
    w = jnp.pad(w_folded, ((0, 0), (0, e_pad - E))).astype(jnp.bfloat16)
    b = jnp.pad(cls_bias.astype(jnp.float32), (0, e_pad - E),
                constant_values=_NEG_INF).reshape(1, e_pad)
    return w, b, E


def top1_gating_head(pooled, w, b, num_experts, *, block_b=512, vmem_limit_bytes=None):
    """pooled: [B, H] token-0 hidden states (any float dtype, no copy made).

    Returns softmax probabilities [B, num_experts] (f32).
    With bf16 activations the double-buffered x tile at block_b=512, H=4096 is
    ~8 MiB, fitting the default scoped VMEM on every generation; pass
    vmem_limit_bytes (and/or a larger block_b) to push further on v5e/v6e —
    never reuse a v5e/v6e setting on v7x (64 MiB physical VMEM).
    """
    B, H = pooled.shape
    e_pad = w.shape[1]

    tb = _pick_batch_tile(B, block_b)
    grid = (pl.cdiv(B, tb),)
    # Ragged last block invariant: every row's math is independent and the
    # trailing [:, :E] / row range outside B is never read back, so the
    # garbage rows Pallas pads a partial block with are harmless.

    probs_pad = pl.pallas_call(
        _gating_head_kernel,
        out_shape=jax.ShapeDtypeStruct((B, e_pad), jnp.float32),
        grid=grid,
        in_specs=[
            pl.BlockSpec((tb, H), lambda i: (i, 0)),       # batch-tiled activations
            pl.BlockSpec((H, e_pad), lambda i: (0, 0)),    # gamma-folded weight (resident)
            pl.BlockSpec((1, e_pad), lambda i: (0, 0)),    # bias (resident)
        ],
        out_specs=pl.BlockSpec((tb, e_pad), lambda i: (i, 0)),
        compiler_params=pltpu.CompilerParams(
            dimension_semantics=("parallel",),
            vmem_limit_bytes=vmem_limit_bytes),
    )(pooled, w, b)
    return probs_pad[:, :num_experts]


def top1_gating_forward(input_ids, embed_table, gating_params):
    # TODO(synk): the frozen pretrained Llama backbone (first 8 decoder layers)
    # needs a checkpoint and is not reproducible here; an embedding lookup
    # stands in for `outputs.last_hidden_state`.
    # RMSNorm is per-token, so norm(h)[:, 0] == norm(h[:, 0]): pool token 0 at
    # the source instead of materializing / DMAing the full [B, S, H] tensor,
    # and stream it in the backbone's native (bf16) dtype with no extra copy.
    pooled = embed_table[input_ids[:, 0]]                  # [B, H] plain-JAX glue
    w, b, num_experts = gating_params
    return top1_gating_head(pooled, w, b, num_experts)


if __name__ == "__main__":
    # Small, deterministic synthetic config.
    B, S, H, E = 2, 8, 32, 4      # batch, seq, hidden_size, num_experts
    VOCAB = 64

    key = jax.random.PRNGKey(0)
    k_ids, k_emb, k_gamma, k_w, k_b = jax.random.split(key, 5)

    input_ids = jax.random.randint(k_ids, (B, S), 0, VOCAB, dtype=jnp.int32)
    # Backbone stand-in emits bf16, as a real Llama backbone would.
    embed_table = jax.random.normal(k_emb, (VOCAB, H), dtype=jnp.float32).astype(jnp.bfloat16)
    rms_weight = 1.0 + 0.01 * jax.random.normal(k_gamma, (H,), dtype=jnp.float32)
    # nn.Linear(hidden_size, num_experts): weight [E, H], bias [E]; store weight^T.
    cls_weight_t = (0.02 * jax.random.normal(k_w, (E, H), dtype=jnp.float32)).T
    cls_bias = 0.01 * jax.random.normal(k_b, (E,), dtype=jnp.float32)

    gating_params = prepare_gating_params(rms_weight, cls_weight_t, cls_bias)
    probs = top1_gating_forward(input_ids, embed_table, gating_params)
    probs = jax.block_until_ready(probs)

    # Reference: same math as the PyTorch forward (norm over the full sequence,
    # then pool token 0) in pure f32 JAX.
    h = embed_table[input_ids].astype(jnp.float32)
    hn = h * jax.lax.rsqrt(jnp.mean(h * h, -1, keepdims=True) + RMS_NORM_EPS)
    hn = hn * rms_weight
    logits = hn[:, 0, :] @ cls_weight_t + cls_bias
    ref = jax.nn.softmax(logits, axis=-1)

    assert probs.shape == (B, E)
    # Tolerance covers bf16 matmul operands (gamma-folded weight) vs. pure f32.
    assert jnp.allclose(probs, ref, atol=2e-3, rtol=2e-3), (probs, ref)
    # Exact reciprocal in the softmax: rows sum to 1 to float accuracy.
    assert jnp.allclose(jnp.sum(probs, -1), 1.0, atol=1e-5)

    print("KERNEL_OK")
</pallas_src>

<mosaic_0001>
module attributes {stable_mosaic.version = 11 : i64} {
  func.func @_gating_head_kernel(%arg0: i32, %arg1: memref<2x32xbf16, #tpu.memory_space<vmem>>, %arg2: memref<32x128xbf16, #tpu.memory_space<vmem>>, %arg3: memref<1x128xf32, #tpu.memory_space<vmem>>, %arg4: memref<2x128xf32, #tpu.memory_space<vmem>>) attributes {dimension_semantics = [#tpu.dimension_semantics<parallel>], iteration_bounds = array<i64: 1>, scalar_prefetch = 0 : i64, scratch_operands = 0 : i64, tpu.core_type = #tpu.core_type<tc>, window_params = [{transform_indices = @transform_0, window_bounds = array<i64: 2, 32>}, {pipeline_mode = #tpu.pipeline_mode<synchronous>, transform_indices = @transform_1, window_bounds = array<i64: 32, 128>}, {pipeline_mode = #tpu.pipeline_mode<synchronous>, transform_indices = @transform_2, window_bounds = array<i64: 1, 128>}, {transform_indices = @transform_3, window_bounds = array<i64: 2, 128>}]} {
    %c0 = arith.constant 0 : index
    %c0_0 = arith.constant 0 : index
    %0 = vector.load %arg1[%c0, %c0_0] : memref<2x32xbf16, #tpu.memory_space<vmem>>, vector<2x32xbf16>
    %1 = arith.extf %0 : vector<2x32xbf16> to vector<2x32xf32>
    %2 = arith.mulf %1, %1 : vector<2x32xf32>
    %cst = arith.constant dense<0.000000e+00> : vector<2xf32>
    %3 = vector.multi_reduction <add>, %2, %cst [1] : vector<2x32xf32> to vector<2xf32>
    %4 = vector.shape_cast %3 : vector<2xf32> to vector<2x1xf32>
    %cst_1 = arith.constant 3.200000e+01 : f32
    %5 = vector.broadcast %cst_1 : f32 to vector<2x1xf32>
    %6 = arith.divf %4, %5 : vector<2x1xf32>
    %cst_2 = arith.constant 9.99999997E-7 : f32
    %7 = vector.broadcast %cst_2 : f32 to vector<2x1xf32>
    %8 = arith.addf %6, %7 : vector<2x1xf32>
    %9 = math.rsqrt %8 : vector<2x1xf32>
    %c0_3 = arith.constant 0 : index
    %c0_4 = arith.constant 0 : index
    %10 = vector.load %arg2[%c0_3, %c0_4] : memref<32x128xbf16, #tpu.memory_space<vmem>>, vector<32x128xbf16>
    %cst_5 = arith.constant dense<0.000000e+00> : vector<2x128xf32>
    %11 = tpu.matmul %0, %10, %cst_5 {dimension_numbers = #tpu.dot_dimension_numbers<[1], [0], [0], [1], [0, 0, 1, 1], [], []>} : vector<2x32xbf16>, vector<32x128xbf16>, vector<2x128xf32> -> vector<2x128xf32>
    %12 = vector.broadcast %9 : vector<2x1xf32> to vector<2x128xf32>
    %13 = arith.mulf %11, %12 : vector<2x128xf32>
    %c0_6 = arith.constant 0 : index
    %c0_7 = arith.constant 0 : index
    %14 = vector.load %arg3[%c0_6, %c0_7] : memref<1x128xf32, #tpu.memory_space<vmem>>, vector<1x128xf32>
    %15 = vector.broadcast %14 : vector<1x128xf32> to vector<2x128xf32>
    %16 = arith.addf %13, %15 : vector<2x128xf32>
    %cst_8 = arith.constant dense<0xFF800000> : vector<2xf32>
    %17 = vector.multi_reduction <maximumf>, %16, %cst_8 [1] : vector<2x128xf32> to vector<2xf32>
    %18 = vector.shape_cast %17 : vector<2xf32> to vector<2x1xf32>
    %19 = vector.broadcast %18 : vector<2x1xf32> to vector<2x128xf32>
    %20 = arith.subf %16, %19 : vector<2x128xf32>
    %21 = math.exp %20 : vector<2x128xf32>
    %cst_9 = arith.constant dense<0.000000e+00> : vector<2xf32>
    %22 = vector.multi_reduction <add>, %21, %cst_9 [1] : vector<2x128xf32> to vector<2xf32>
    %23 = vector.shape_cast %22 : vector<2xf32> to vector<2x1xf32>
    %24 = tpu.reciprocal %23 : vector<2x1xf32> -> vector<2x1xf32>
    %25 = vector.broadcast %24 : vector<2x1xf32> to vector<2x128xf32>
    %26 = arith.mulf %21, %25 : vector<2x128xf32>
    %c0_10 = arith.constant 0 : index
    %c0_11 = arith.constant 0 : index
    %27 = vector.load %arg4[%c0_10, %c0_11] : memref<2x128xf32, #tpu.memory_space<vmem>>, vector<2x128xf32>
    tpu.vector_store %arg4[%c0_10, %c0_11], %26 {strides = array<i32>} : memref<2x128xf32, #tpu.memory_space<vmem>>, vector<2x128xf32>,
    return
  }
  func.func @transform_0(%arg0: i32) -> (i32, i32) {
    %c0_i32 = arith.constant 0 : i32
    %c0_i32_0 = arith.constant 0 : i32
    return %arg0, %c0_i32 : i32, i32
  }
  func.func @transform_1(%arg0: i32) -> (i32, i32) {
    %c0_i32 = arith.constant 0 : i32
    %c0_i32_0 = arith.constant 0 : i32
    %c0_i32_1 = arith.constant 0 : i32
    return %c0_i32, %c0_i32_0 : i32, i32
  }
  func.func @transform_2(%arg0: i32) -> (i32, i32) {
    %c0_i32 = arith.constant 0 : i32
    %c0_i32_0 = arith.constant 0 : i32
    %c0_i32_1 = arith.constant 0 : i32
    return %c0_i32, %c0_i32_0 : i32, i32
  }
  func.func @transform_3(%arg0: i32) -> (i32, i32) {
    %c0_i32 = arith.constant 0 : i32
    %c0_i32_0 = arith.constant 0 : i32
    return %arg0, %c0_i32 : i32, i32
  }
}

</mosaic_0001>

<llo_original>
// kernel: tpu_custom_call.1
$region0: #{tpu_custom_call.1}
  #allocation0 [shape = 'u32[]', space=smem, size = 0x4, offset = 0x4, fixed_abs, tag = 'smem constant byte address 0x4 - core index']
  #allocation1 [shape = 'u32[72,128]{1,0:T(1,128)}', space=vmem, size = 0x9000, scoped, tag = 'internal scratch']
  %s0 = inlined_call_operand.hbm [shape: bf16[2,32], index: 0, kind: input, shape index: {}]
  %s1 = inlined_call_operand.hbm [shape: bf16[32,128], index: 1, kind: input, shape index: {}]
  %s2 = inlined_call_operand.vmem [shape: f32[1,128], index: 2, kind: input, shape index: {}]
  %s3 = inlined_call_operand.hbm [shape: f32[2,128], index: 3, kind: output, shape index: {}]
  %s4 = sld [smem:[#allocation0]]
  $region30: #{tpu_custom_call.1} parent=0
    _
  %s6 = ssub.s32 1, %s4
  %s7 = scalar_select 0, %s6, %s4
  $region1: #{tpu_custom_call.1} parent=0
    #allocation2 [shape = 'u8[512]{0}', space=vmem, size = 0x400, scoped, tag = 'input window, operand 0, single buffered']
    #allocation3 [shape = 's32[1]{0}', space=sflag, size = 0x4, scoped, tag = 'scoped memory for tpu_custom_call.1']
    #allocation4 [shape = 's32[1]{0}', space=sflag, size = 0x4, scoped, tag = 'scoped memory for tpu_custom_call.1']
    #allocation5 [shape = 'u8[8192]{0}', space=vmem, size = 0x2000, scoped, tag = 'input window, operand 1, single buffered']
    #allocation6 [shape = 's32[1]{0}', space=sflag, size = 0x4, scoped, tag = 'scoped memory for tpu_custom_call.1']
    #allocation7 [shape = 'u8[1024]{0}', space=vmem, size = 0x400, scoped, tag = 'output window, operand 0, single buffered']
    %8 = vsyncpa [#allocation3], 0
    %9 = vsyncpa [#allocation6], 0
    %10 = vsyncpa [#allocation4], 0
    // Predicated region
    $region2: #{tpu_custom_call.1} parent=1 // pred_check
      _
    $region3: #{tpu_custom_call.1} parent=1 // pred_check_branch
      %12 = sbr.rel (0) target = $region5
    $region4: #{tpu_custom_call.1} parent=1 // pred_region
      %14 = vsyncadd [#allocation3], 0
      %s16 = sshll.u32 %s0, 4
      %s17 = int_to_ptr.hbm [resolvable:$true] %s16
      %s18 = sshll.u32 [#allocation2], 4
      %s19 = int_to_ptr.vmem [resolvable:$true] %s18
      %21 = dma.hbm_to_vmem [thread:$0]  %s17, 16, %s19, [#allocation3]
    $region5: #{tpu_custom_call.1} parent=1 // pred_fallthru
      _
    // Predicated region
    $region6: #{tpu_custom_call.1} parent=1 // pred_check
      _
    $region7: #{tpu_custom_call.1} parent=1 // pred_check_branch
      %23 = sbr.rel (0) target = $region9
    $region8: #{tpu_custom_call.1} parent=1 // pred_region
      %25 = vsyncadd [#allocation6], 0
      %s26 = sshll.u32 %s1, 4
      %s27 = int_to_ptr.hbm [resolvable:$true] %s26
      %s28 = sshll.u32 [#allocation5], 4
      %s29 = int_to_ptr.vmem [resolvable:$true] %s28
      %34 = dma.hbm_to_vmem [thread:$0]  %s27, 256, %s29, [#allocation6], 64, 64, 4
    $region9: #{tpu_custom_call.1} parent=1 // pred_fallthru
      _
    // Predicated region
    $region10: #{tpu_custom_call.1} parent=1 // pred_check
      _
    $region11: #{tpu_custom_call.1} parent=1 // pred_check_branch
      %36 = sbr.rel (0) target = $region13
    $region12: #{tpu_custom_call.1} parent=1 // pred_region
      _
    $region13: #{tpu_custom_call.1} parent=1 // pred_fallthru
      _
    // Predicated region
    $region14: #{tpu_custom_call.1} parent=1 // pred_check
      _
    $region15: #{tpu_custom_call.1} parent=1 // pred_check_branch
      %38 = sbr.rel (0) target = $region17
    $region16: #{tpu_custom_call.1} parent=1 // pred_region
      %40 = dma.done [#allocation3], 16
    $region17: #{tpu_custom_call.1} parent=1 // pred_fallthru
      _
    // Predicated region
    $region18: #{tpu_custom_call.1} parent=1 // pred_check
      _
    $region19: #{tpu_custom_call.1} parent=1 // pred_check_branch
      %42 = sbr.rel (0) target = $region21
    $region20: #{tpu_custom_call.1} parent=1 // pred_region
      %44 = dma.done [#allocation6], 256
    $region21: #{tpu_custom_call.1} parent=1 // pred_fallthru
      _
    %v46 = vld [vmem:[#allocation2] sm:$0x1]
    %v47 = vunpack.c.l.bf16 %v46
    %v48 = vmul.f32 %v47, %v47
    %vm49 = vcmask 254976
    %v50 = vsel %vm49, %v48, 0.0
    %51 = vadd.xlane.f32.xlu0 %v50
    %v52 = vpop.xlane.xlu0 %51
    %v53 = vrcp.pop 32.0
    %v54 = vmul.f32 32.0, %v53
    %v55 = vsub.f32 1.0, %v54
    %v56 = vmul.f32 %v53, %v55
    %v57 = vadd.f32 %v53, %v56
    %vm58 = vweird.f32 %v53
    %v59 = vsel %vm58, %v53, %v57
    %v60 = vmul.f32 %v52, %v59
    %v61 = vadd.f32 %v60, 1e-06
    %v62 = vrsqrt.pop %v61
    %v63 = vmul.f32 %v62, %v61
    %v64 = vmul.f32 %v63, %v62
    %v65 = vmul.f32 0.5, %v64
    %v66 = vsub.f32 1.5, %v65
    %v67 = vmul.f32 %v62, %v66
    %vm68 = vweird.f32 %v61
    %vm69 = vweird.f32 %v62
    %vm70 = vmor %vm68, %vm69
    %v71 = vsel %vm70, %v62, %v67
    %v72 = vld [vmem:[#allocation5] sm:$0xf]
    %v73 = vld [vmem:[#allocation5 + $0x4] sm:$0xf]
    %v74 = vld [vmem:[#allocation5 + $0x8] sm:$0xf]
    %v75 = vld [vmem:[#allocation5 + $0xc] sm:$0xf]
    %v80 = vunpack.c.l.b16 %v72
    %v81 = vunpack.c.l.b16 %v73
    %v82 = vunpack.c.l.b16 %v74
    %v83 = vunpack.c.l.b16 %v75
    %v84 = vpack.c.b16 %v81, %v80
    %v85 = vpack.c.b16 %v83, %v82
    %vm88 = vcmask 261120
    %v90 = vsel %vm88, %v46, 0
    %92 = vmatpush.bf16.msra.mxu0 0
    %93 = vmatpush.bf16.msra.mxu0 0
    %94 = vmatpush.bf16.msra.mxu0 0
    %95 = vmatpush.bf16.msra.mxu0 0
    %96 = vmatpush.bf16.msra.mxu0 0
    %97 = vmatpush.bf16.msra.mxu0 0
    %98 = vmatpush.bf16.msra.mxu0 %v85
    %99 = vmatpush.bf16.msra.mxu0 %v84
    %100 = vmatmul.bf16.gmra.mxu0 %v90
    %v101 = vpop.f32.mrf.mxu0
    %v102 = vadd.f32 0.0, %v101
    %v103 = vpop.f32.mrf.mxu0
    %104 = vdwg.mxu0
    %v105 = vmul.f32 %v102, %v71
    %v106 = vld [vmem:[%s2] sm:$0x1]
    %v108 = vperm.slane %v106, 0
    %v110 = vadd.f32 %v105, %v108
    %vm111 = vcmask 1041408
    %v112 = vsel %vm111, %v110, -inf
    %113 = vmax.xlane.f32.xlu0 %v112
    %v114 = vpop.xlane.xlu0 %113
    %v115 = vsub.f32 %v110, %v114
    %v116 = vmul.f32 %v115, 1.442695
    %v117 = vpow.pop %v116
    %v118 = vsel %vm111, %v117, 0.0
    %119 = vadd.xlane.f32.xlu0 %v118
    %v120 = vpop.xlane.xlu0 %119
    %v121 = vrcp.pop %v120
    %v122 = vmul.f32 %v120, %v121
    %v123 = vsub.f32 1.0, %v122
    %v124 = vmul.f32 %v121, %v123
    %v125 = vadd.f32 %v121, %v124
    %vm126 = vweird.f32 %v120
    %vm127 = vweird.f32 %v121
    %vm128 = vmor %vm126, %vm127
    %v129 = vsel %vm128, %v121, %v125
    %v130 = vand.u32 2147483647, %v120
    %vm131 = vcmp.eq.f32.partialorder %v130, 8.507059e+37
    %v132 = vand.u32 %v120, 2147483648
    %v133 = vor.u32 1.1754944e-38, %v132
    %v134 = vsel %vm131, %v133, %v129
    %v135 = vmul.f32 %v117, %v134
    %136 = vst [vmem:[#allocation7] sm:$0x3] %v135
    // Predicated region
    $region22: #{tpu_custom_call.1} parent=1 // pred_check
      _
    $region23: #{tpu_custom_call.1} parent=1 // pred_check_branch
      %138 = sbr.rel (0) target = $region25
    $region24: #{tpu_custom_call.1} parent=1 // pred_region
      %140 = vsyncadd [#allocation4], 0
      %s142 = sshll.u32 [#allocation7], 4
      %s143 = int_to_ptr.vmem [resolvable:$true] %s142
      %s144 = sshll.u32 %s3, 4
      %s145 = int_to_ptr.hbm [resolvable:$true] %s144
      %147 = dma.vmem_to_hbm [thread:$0]  %s143, 32, %s145, [#allocation4]
    $region25: #{tpu_custom_call.1} parent=1 // pred_fallthru
      _
    // Predicated region
    $region26: #{tpu_custom_call.1} parent=1 // pred_check
      _
    $region27: #{tpu_custom_call.1} parent=1 // pred_check_branch
      %149 = sbr.rel (0) target = $region29
    $region28: #{tpu_custom_call.1} parent=1 // pred_region
      %151 = dma.done [#allocation4], 32
    $region29: #{tpu_custom_call.1} parent=1 // pred_fallthru
      _
    %152 = vsyncpa [#allocation3], 1
    %153 = vsyncpa [#allocation6], 1
    %154 = vsyncpa [#allocation4], 1

</llo_original>
